<compile_context>
chip_gen: v7x
topology: tpu7x:2x2x1
jax: 0.10.0
libtpu: 0.0.40
codegen_flags: <defaults>
</compile_context>

<pallas_src>
import jax
import jax.numpy as jnp
import numpy as np
from jax.experimental import pallas as pl
from jax.experimental.pallas import tpu as pltpu


# ---------------------------------------------------------------------------
# build_grid (standard slot-attention grid buffer, matches the PyTorch buffer)
# ---------------------------------------------------------------------------
def build_grid(resolution):
    """(1, H, W, 4) with channels [y, x, 1-y, 1-x] in [0, 1]."""
    H, W = resolution
    ry = jnp.linspace(0.0, 1.0, H)
    rx = jnp.linspace(0.0, 1.0, W)
    gy, gx = jnp.meshgrid(ry, rx, indexing="ij")
    grid = jnp.stack([gy, gx], axis=-1)                      # (H, W, 2)
    grid = jnp.concatenate([grid, 1.0 - grid], axis=-1)      # (H, W, 4)
    return grid[None].astype(jnp.float32)                    # (1, H, W, 4)


# ---------------------------------------------------------------------------
# Batch-independent position embedding, computed ONCE (bias folded in).
#   pos[d, n] = sum_g W[d, g] * grid[n, g] + b[d]      -> (D, H*W), f32
# The PyTorch permute(0, 3, 1, 2) is folded into this orientation.
# ---------------------------------------------------------------------------
def compute_pos_embedding(weight, bias, grid):
    _, H, W, G = grid.shape
    g_t = grid.reshape(H * W, G).astype(jnp.float32).T        # (G, N)
    w = weight.astype(jnp.float32)                            # (D, G)
    b = bias.astype(jnp.float32)[:, None]                     # (D, 1)
    return w @ g_t + b                                        # (D, N)


# ---------------------------------------------------------------------------
# Kernel: pure broadcast-add of the precomputed embedding over the batch tile.
# ---------------------------------------------------------------------------
def _soft_pos_embed_kernel(x_ref, pos_ref, o_ref):
    """x_ref: (TB, D, N); pos_ref: (D, N) f32; o_ref: (TB, D, N)."""
    x = x_ref[...].astype(jnp.float32)
    o_ref[...] = (x + pos_ref[...][None, :, :]).astype(o_ref.dtype)


# ---------------------------------------------------------------------------
# Batch-tile selection (generation-aware, conservative for all of v5e/v6e/v7x)
# ---------------------------------------------------------------------------
def _pick_batch_tile(B, D, N, itemsize):
    row_bytes = D * N * itemsize                 # bytes per batch row (block slice)
    # Double-buffered input + output => ~4 live blocks. Stay under 12 MiB so we
    # fit v5e's 16 MiB scoped-VMEM default (v6e/v7x default is 32 MiB; raise
    # vmem_limit_bytes there if you ever want bigger tiles).
    vmem_budget = 12 * 1024 * 1024
    cap = max(1, vmem_budget // (4 * row_bytes))
    tb = min(B, cap)
    # Guarantee >= 2 grid steps so the "parallel" axis shards across v7x's 2 TCs.
    if B >= 2:
        tb = min(tb, -(-B // 2))
    return max(1, tb)


# ---------------------------------------------------------------------------
# Wrapper
# ---------------------------------------------------------------------------
def soft_position_embed(x_nchw, pos, *, batch_tile=None):
    """PyTorch-equivalent forward: inputs + Linear(grid).permute(0,3,1,2).

    x_nchw: (B, D, H, W); pos: (D, H*W) f32 from compute_pos_embedding().
    """
    B, D, H, W = x_nchw.shape
    N = H * W
    assert pos.shape == (D, N), (pos.shape, (D, N))

    tb = _pick_batch_tile(B, D, N, x_nchw.dtype.itemsize) if batch_tile is None \
        else max(1, min(batch_tile, B))
    n_steps = pl.cdiv(B, tb)

    x_flat = x_nchw.reshape(B, D, N)             # contiguous reshape (free)

    out = pl.pallas_call(
        _soft_pos_embed_kernel,
        out_shape=jax.ShapeDtypeStruct((B, D, N), x_nchw.dtype),
        grid=(n_steps,),
        in_specs=[
            pl.BlockSpec((tb, D, N), lambda i: (i, 0, 0)),
            pl.BlockSpec((D, N), lambda i: (0, 0)),
        ],
        out_specs=pl.BlockSpec((tb, D, N), lambda i: (i, 0, 0)),
        compiler_params=pltpu.CompilerParams(
            dimension_semantics=("parallel",)),
    )(x_flat, pos)

    return out.reshape(B, D, H, W)


def soft_position_embed_module(x_nchw, weight, bias, grid, *, batch_tile=None):
    """Convenience entry point mirroring the module's forward(inputs)."""
    pos = compute_pos_embedding(weight, bias, grid)
    return soft_position_embed(x_nchw, pos, batch_tile=batch_tile)


# ---------------------------------------------------------------------------
# Pure-JAX (XLA) reference matching the PyTorch semantics
# ---------------------------------------------------------------------------
def reference_forward(x_nchw, weight, bias, grid):
    emb = jnp.einsum("bhwg,dg->bhwd", grid, weight) + bias    # (1, H, W, D)
    emb = jnp.transpose(emb, (0, 3, 1, 2))                    # (1, D, H, W)
    return x_nchw + emb


# ---------------------------------------------------------------------------
if __name__ == "__main__":
    # Config consistent with the module: the PyTorch Linear takes
    # num_channels + 1 = 4 features (build_grid always emits 4 channels),
    # so num_channels = 3; hidden_size = 32; resolution = (16, 16); batch = 2.
    B = 2
    num_channels = 3
    hidden_size = 32
    resolution = (16, 16)
    H, W = resolution
    assert num_channels + 1 == 4, "SoftPositionEmbed requires num_channels == 3"

    key = jax.random.PRNGKey(0)
    kx, kw, kb = jax.random.split(key, 3)
    x = jax.random.normal(kx, (B, hidden_size, H, W), jnp.float32)
    weight = jax.random.normal(kw, (hidden_size, num_channels + 1), jnp.float32) * 0.1
    bias = jax.random.normal(kb, (hidden_size,), jnp.float32) * 0.01
    grid = build_grid(resolution)

    out = jax.jit(soft_position_embed_module)(x, weight, bias, grid)
    out = jax.block_until_ready(out)
    assert out.shape == x.shape, (out.shape, x.shape)

    ref = jax.block_until_ready(reference_forward(x, weight, bias, grid))
    np.testing.assert_allclose(np.asarray(out), np.asarray(ref),
                               atol=1e-2, rtol=1e-2)

    print("KERNEL_OK")
</pallas_src>

<mosaic_0001>
module attributes {stable_mosaic.version = 11 : i64} {
  func.func @_soft_pos_embed_kernel(%arg0: i32, %arg1: memref<1x32x256xf32, #tpu.memory_space<vmem>>, %arg2: memref<32x256xf32, #tpu.memory_space<vmem>>, %arg3: memref<1x32x256xf32, #tpu.memory_space<vmem>>) attributes {dimension_semantics = [#tpu.dimension_semantics<parallel>], iteration_bounds = array<i64: 2>, scalar_prefetch = 0 : i64, scratch_operands = 0 : i64, tpu.core_type = #tpu.core_type<tc>, window_params = [{transform_indices = @transform_0, window_bounds = array<i64: 1, 32, 256>}, {pipeline_mode = #tpu.pipeline_mode<synchronous>, transform_indices = @transform_1, window_bounds = array<i64: 32, 256>}, {transform_indices = @transform_2, window_bounds = array<i64: 1, 32, 256>}]} {
    %c0 = arith.constant 0 : index
    %c0_0 = arith.constant 0 : index
    %c0_1 = arith.constant 0 : index
    %0 = vector.load %arg1[%c0, %c0_0, %c0_1] : memref<1x32x256xf32, #tpu.memory_space<vmem>>, vector<1x32x256xf32>
    %c0_2 = arith.constant 0 : index
    %c0_3 = arith.constant 0 : index
    %1 = vector.load %arg2[%c0_2, %c0_3] : memref<32x256xf32, #tpu.memory_space<vmem>>, vector<32x256xf32>
    %2 = vector.shape_cast %1 : vector<32x256xf32> to vector<1x32x256xf32>
    %3 = arith.addf %0, %2 : vector<1x32x256xf32>
    %c0_4 = arith.constant 0 : index
    %c0_5 = arith.constant 0 : index
    %c0_6 = arith.constant 0 : index
    %4 = vector.load %arg3[%c0_4, %c0_5, %c0_6] : memref<1x32x256xf32, #tpu.memory_space<vmem>>, vector<1x32x256xf32>
    tpu.vector_store %arg3[%c0_4, %c0_5, %c0_6], %3 {strides = array<i32>} : memref<1x32x256xf32, #tpu.memory_space<vmem>>, vector<1x32x256xf32>,
    return
  }
  func.func @transform_0(%arg0: i32) -> (i32, i32, i32) {
    %c0_i32 = arith.constant 0 : i32
    %c0_i32_0 = arith.constant 0 : i32
    %c0_i32_1 = arith.constant 0 : i32
    return %arg0, %c0_i32, %c0_i32_0 : i32, i32, i32
  }
  func.func @transform_1(%arg0: i32) -> (i32, i32) {
    %c0_i32 = arith.constant 0 : i32
    %c0_i32_0 = arith.constant 0 : i32
    %c0_i32_1 = arith.constant 0 : i32
    return %c0_i32, %c0_i32_0 : i32, i32
  }
  func.func @transform_2(%arg0: i32) -> (i32, i32, i32) {
    %c0_i32 = arith.constant 0 : i32
    %c0_i32_0 = arith.constant 0 : i32
    %c0_i32_1 = arith.constant 0 : i32
    return %arg0, %c0_i32, %c0_i32_0 : i32, i32, i32
  }
}

</mosaic_0001>

<llo_original>
// kernel: soft_position_embed_module.1
$region0: #{soft_position_embed_module.1}
  #allocation0 [shape = 'u32[]', space=smem, size = 0x4, offset = 0x4, fixed_abs, tag = 'smem constant byte address 0x4 - core index']
  #allocation1 [shape = 'u32[144,128]{1,0:T(1,128)}', space=vmem, size = 0x12000, scoped, tag = 'internal scratch']
  %s0 = inlined_call_operand.vmem [shape: f32[2,32,256], index: 0, kind: input, shape index: {}]
  %s1 = inlined_call_operand.vmem [shape: f32[32,256], index: 1, kind: input, shape index: {}]
  %s2 = inlined_call_operand.vmem [shape: f32[2,32,256], index: 2, kind: output, shape index: {}]
  %s3 = sld [smem:[#allocation0]]
  $region41: #{soft_position_embed_module.1} parent=0
    _
  %s5 = ssub.s32 1, %s3
  %s6 = scalar_select 0, %s5, %s3
  loop: start=0, step=1, limit=4
  $region2: #{soft_position_embed_module.1} parent=0 // loop_pre_header
    _
  $region3: #{soft_position_embed_module.1} parent=0 // loop_header
    %s8 = sphi 0, %s12
    %p9 = scmp.ge.s32.totalorder %s8, 4
    %s18 = sphi 0, %s20
    %s21 = sphi 0, %s18
    %s22 = sphi 0, %s21
    %s38 = sphi 0, %s22
    %s42 = sphi 0, %s42
    %s44 = sphi 0, %s42
    %s45 = sphi 0, %s44
    %s59 = sphi 0, %s45
    %s65 = sphi 0, %s67
    %s68 = sphi 0, %s65
    %s69 = sphi 0, %s68
    %s85 = sphi 0, %s69
  $region4: #{soft_position_embed_module.1} parent=0 // loop_header_branch
    %11 = sbr.rel (%p9) target = $region8
  $region5: #{soft_position_embed_module.1} parent=0 // loop_body
    %s13 = ssub.s32 %s8, 1
    %s14 = ssub.s32 %s8, 2
    %s15 = sadd.s32 %s8, 1
    %s16 = ssub.s32 %s8, %s15
    %p17 = scmp.eq.s32.totalorder %s16, 0
    %s19 = sadd.s32 %s18, 1
    %s20 = scalar_select %p17, %s18, %s19
    %p23 = pneg %p17
    %p24 = scmp.eq.s32.totalorder %s8, 1
    %p25 = por %p23, %p24
    %p26 = scmp.ne.s32.totalorder %s18, %s21
    %p27 = scmp.eq.s32.totalorder %s8, 0
    %p28 = por %p26, %p27
    %p29 = scmp.ne.s32.totalorder %s18, %s21
    %p30 = scmp.eq.s32.totalorder %s13, 1
    %p31 = por %p29, %p30
    %p32 = scmp.ne.s32.totalorder %s21, %s22
    %p33 = scmp.eq.s32.totalorder %s13, 0
    %p34 = por %p32, %p33
    %p35 = scmp.ne.s32.totalorder %s21, %s22
    %p36 = scmp.eq.s32.totalorder %s14, 1
    %p37 = por %p35, %p36
    %p39 = scmp.ne.s32.totalorder %s22, %s38
    %p40 = scmp.eq.s32.totalorder %s14, 0
    %p41 = por %p39, %p40
    %s43 = sadd.s32 %s42, 1
    %p46 = scmp.eq.s32.totalorder %s8, 1
    %p47 = scmp.ne.s32.totalorder %s42, %s44
    %p48 = scmp.eq.s32.totalorder %s8, 0
    %p49 = por %p47, %p48
    %p50 = scmp.ne.s32.totalorder %s42, %s44
    %p51 = scmp.eq.s32.totalorder %s13, 1
    %p52 = por %p50, %p51
    %p53 = scmp.ne.s32.totalorder %s44, %s45
    %p54 = scmp.eq.s32.totalorder %s13, 0
    %p55 = por %p53, %p54
    %p56 = scmp.ne.s32.totalorder %s44, %s45
    %p57 = scmp.eq.s32.totalorder %s14, 1
    %p58 = por %p56, %p57
    %p60 = scmp.ne.s32.totalorder %s45, %s59
    %p61 = scmp.eq.s32.totalorder %s14, 0
    %p62 = por %p60, %p61
    %s63 = ssub.s32 %s8, %s15
    %p64 = scmp.eq.s32.totalorder %s63, 0
    %s66 = sadd.s32 %s65, 1
    %s67 = scalar_select %p64, %s65, %s66
    %p70 = pneg %p64
    %p71 = scmp.eq.s32.totalorder %s8, 1
    %p72 = por %p70, %p71
    %p73 = scmp.ne.s32.totalorder %s65, %s68
    %p74 = scmp.eq.s32.totalorder %s8, 0
    %p75 = por %p73, %p74
    %p76 = scmp.ne.s32.totalorder %s65, %s68
    %p77 = scmp.eq.s32.totalorder %s13, 1
    %p78 = por %p76, %p77
    %p79 = scmp.ne.s32.totalorder %s68, %s69
    %p80 = scmp.eq.s32.totalorder %s13, 0
    %p81 = por %p79, %p80
    %p82 = scmp.ne.s32.totalorder %s68, %s69
    %p83 = scmp.eq.s32.totalorder %s14, 1
    %p84 = por %p82, %p83
    %p86 = scmp.ne.s32.totalorder %s69, %s85
    %p87 = scmp.eq.s32.totalorder %s14, 0
    %p88 = por %p86, %p87
    %p89 = scmp.le.s32.totalorder 1, %s8
    %p90 = scmp.lt.s32.totalorder %s8, 3
    %p91 = pnand %p89, %p90
    %p92 = pneg %p91
    // Predicated region
    $region9: #{soft_position_embed_module.1} parent=5 // pred_check
      _
    $region10: #{soft_position_embed_module.1} parent=5 // pred_check_branch
      %94 = sbr.rel (%p91) target = $region12
    $region11: #{soft_position_embed_module.1} parent=5 // pred_region
      %s95 = ssub.s32 %s8, 1
      // Predicated region
      $region13: #{soft_position_embed_module.1} parent=11 // pred_check
        %p96 = pneg %p55
      $region14: #{soft_position_embed_module.1} parent=11 // pred_check_branch
        %98 = sbr.rel (%p96) target = $region16
      $region15: #{soft_position_embed_module.1} parent=11 // pred_region
        _
      $region16: #{soft_position_embed_module.1} parent=11 // pred_fallthru
        _
    $region12: #{soft_position_embed_module.1} parent=5 // pred_fallthru
      _
    %p99 = scmp.lt.s32.totalorder %s8, 2
    // Predicated region
    $region17: #{soft_position_embed_module.1} parent=5 // pred_check
      %p100 = pneg %p99
    $region18: #{soft_position_embed_module.1} parent=5 // pred_check_branch
      %102 = sbr.rel (%p100) target = $region20
    $region19: #{soft_position_embed_module.1} parent=5 // pred_region
      // Predicated region
      $region21: #{soft_position_embed_module.1} parent=19 // pred_check
        %p103 = pneg %p28
      $region22: #{soft_position_embed_module.1} parent=19 // pred_check_branch
        %105 = sbr.rel (%p103) target = $region24
      $region23: #{soft_position_embed_module.1} parent=19 // pred_region
        %p106 = scmp.lt.s32.totalorder %s8, 1
        %s107 = scalar_select %p106, %s8, 1
        %s108 = smul.addr %s107, 8
        %s109 = smul.addr %s108, 8
        %s110 = scalar_lea.vmem %s0, %s109
      $region24: #{soft_position_embed_module.1} parent=19 // pred_fallthru
        _
    $region20: #{soft_position_embed_module.1} parent=5 // pred_fallthru
      _
    %p111 = scmp.le.s32.totalorder 1, %s8
    %p112 = scmp.lt.s32.totalorder %s8, 3
    %p113 = pnand %p111, %p112
    %p114 = pneg %p113
    // Predicated region
    $region25: #{soft_position_embed_module.1} parent=5 // pred_check
      _
    $region26: #{soft_position_embed_module.1} parent=5 // pred_check_branch
      %116 = sbr.rel (%p113) target = $region28
    $region27: #{soft_position_embed_module.1} parent=5 // pred_region
      %s117 = ssub.s32 %s8, 1
      %p118 = scmp.lt.s32.totalorder %s13, 1
      %s119 = scalar_select %p118, %s13, 1
      %s120 = smul.addr %s119, 8
      %s121 = smul.addr %s120, 8
      %s122 = scalar_lea.vmem %s0, %s121
      %p123 = pneg %p34
      %p124 = pneg %p31
      %p125 = pneg %p55
      %p126 = pneg %p52
      %p127 = pneg %p81
      %p128 = pneg %p78
      %p129 = scmp.lt.s32.totalorder %s13, 1
      %s130 = scalar_select %p129, %s13, 1
      %s131 = smul.addr %s130, 8
      %s132 = smul.addr %s131, 8
      %s133 = scalar_lea.vmem %s2, %s132
      %p134 = scmp.lt.s32.totalorder %s13, 1
      %s135 = scalar_select %p134, %s13, 1
      %s136 = smul.addr %s135, 8
      %s137 = smul.addr %s136, 8
      %s138 = scalar_lea.vmem %s0, %s137
      %p139 = scmp.lt.s32.totalorder %s13, 1
      %s140 = scalar_select %p139, %s13, 1
      %s141 = smul.addr %s140, 8
      %s142 = smul.addr %s141, 8
      %s143 = scalar_lea.vmem %s2, %s142
      %v144 = vld [vmem:[%s138] sm:$0xff]
      %v145 = vld [vmem:[%s138 + $0x8] sm:$0xff]
      %v146 = vld [vmem:[%s138 + $0x10] sm:$0xff]
      %v147 = vld [vmem:[%s138 + $0x18] sm:$0xff]
      %v148 = vld [vmem:[%s138 + $0x20] sm:$0xff]
      %v149 = vld [vmem:[%s138 + $0x28] sm:$0xff]
      %v150 = vld [vmem:[%s138 + $0x30] sm:$0xff]
      %v151 = vld [vmem:[%s138 + $0x38] sm:$0xff]
      %v152 = vld [vmem:[%s1] sm:$0xff]
      %v153 = vld [vmem:[%s1 + $0x8] sm:$0xff]
      %v154 = vld [vmem:[%s1 + $0x10] sm:$0xff]
      %v155 = vld [vmem:[%s1 + $0x18] sm:$0xff]
      %v156 = vld [vmem:[%s1 + $0x20] sm:$0xff]
      %v157 = vld [vmem:[%s1 + $0x28] sm:$0xff]
      %v158 = vld [vmem:[%s1 + $0x30] sm:$0xff]
      %v159 = vld [vmem:[%s1 + $0x38] sm:$0xff]
      %v160 = vadd.f32 %v144, %v152
      %v161 = vadd.f32 %v145, %v153
      %v162 = vadd.f32 %v146, %v154
      %v163 = vadd.f32 %v147, %v155
      %v164 = vadd.f32 %v148, %v156
      %v165 = vadd.f32 %v149, %v157
      %v166 = vadd.f32 %v150, %v158
      %v167 = vadd.f32 %v151, %v159
      %168 = vst [vmem:[%s143] sm:$0xff] %v160
      %169 = vst [vmem:[%s143 + $0x8] sm:$0xff] %v161
      %170 = vst [vmem:[%s143 + $0x10] sm:$0xff] %v162
      %171 = vst [vmem:[%s143 + $0x18] sm:$0xff] %v163
      %172 = vst [vmem:[%s143 + $0x20] sm:$0xff] %v164
      %173 = vst [vmem:[%s143 + $0x28] sm:$0xff] %v165
      %174 = vst [vmem:[%s143 + $0x30] sm:$0xff] %v166
      %175 = vst [vmem:[%s143 + $0x38] sm:$0xff] %v167
      %p176 = scmp.lt.s32.totalorder %s13, 1
      %s177 = scalar_select %p176, %s13, 1
      %s178 = smul.addr %s177, 8
      %s179 = smul.addr %s178, 8
      %s180 = scalar_lea.vmem %s2, %s179
      // Predicated region
      $region29: #{soft_position_embed_module.1} parent=27 // pred_check
        %p181 = pneg %p78
      $region30: #{soft_position_embed_module.1} parent=27 // pred_check_branch
        %183 = sbr.rel (%p181) target = $region32
      $region31: #{soft_position_embed_module.1} parent=27 // pred_region
        _
      $region32: #{soft_position_embed_module.1} parent=27 // pred_fallthru
        _
    $region28: #{soft_position_embed_module.1} parent=5 // pred_fallthru
      _
    %p184 = scmp.le.s32.totalorder 2, %s8
    // Predicated region
    $region33: #{soft_position_embed_module.1} parent=5 // pred_check
      %p185 = pneg %p184
    $region34: #{soft_position_embed_module.1} parent=5 // pred_check_branch
      %187 = sbr.rel (%p185) target = $region36
    $region35: #{soft_position_embed_module.1} parent=5 // pred_region
      %s188 = ssub.s32 %s8, 2
      // Predicated region
      $region37: #{soft_position_embed_module.1} parent=35 // pred_check
        %p189 = pneg %p84
      $region38: #{soft_position_embed_module.1} parent=35 // pred_check_branch
        %191 = sbr.rel (%p189) target = $region40
      $region39: #{soft_position_embed_module.1} parent=35 // pred_region
        %p192 = scmp.lt.s32.totalorder %s14, 1
        %s193 = scalar_select %p192, %s14, 1
        %s194 = smul.addr %s193, 8
        %s195 = smul.addr %s194, 8
        %s196 = scalar_lea.vmem %s2, %s195
      $region40: #{soft_position_embed_module.1} parent=35 // pred_fallthru
        _
    $region36: #{soft_position_embed_module.1} parent=5 // pred_fallthru
      _
  $region6: #{soft_position_embed_module.1} parent=0 // loop_footer
    %s12 = sadd.s32 1, %s8
  $region7: #{soft_position_embed_module.1} parent=0 // loop_footer_branch
    %7 = sbr.rel target = $region3
  $region8: #{soft_position_embed_module.1} parent=0 // loop_exit
    _

</llo_original>
